<compile_context>
chip_gen: v7x
topology: tpu7x:2x2x1
jax: 0.10.0
libtpu: 0.0.40
codegen_flags: <defaults>
</compile_context>

<pallas_src>
import math

import jax
import jax.numpy as jnp
from jax.experimental import pallas as pl
from jax.experimental.pallas import tpu as pltpu


def _round_up(x, m):
    return ((x + m - 1) // m) * m


# ---------------------------------------------------------------------------
# Kernel 1: per-node linear prologue
#   trans = (X @ W + b) -> bf16   (feeds the MXU in the propagation kernel)
#   res   =  X @ Wres   -> f32    (linear residual path, in_dim != out_dim)
# ---------------------------------------------------------------------------
def _linear_kernel(x_ref, w_ref, b_ref, wr_ref, t_ref, r_ref):
    x = x_ref[...]
    t = jnp.dot(x, w_ref[...], preferred_element_type=jnp.float32) + b_ref[...]
    t_ref[...] = t.astype(t_ref.dtype)
    r_ref[...] = jnp.dot(x, wr_ref[...], preferred_element_type=jnp.float32)


def _linear(x, w, b, w_res, *, row_tile=512):
    """x: (m, in_pad) bf16; w, w_res: (in_pad, out_pad) bf16; b: (1, out_pad) f32."""
    m, in_pad = x.shape
    out_pad = w.shape[1]
    tm = min(row_tile, _round_up(m, 16))          # 16-row multiple (bf16 sublane pack)
    m_pad = _round_up(m, tm)
    if m_pad != m:
        x = jnp.pad(x, ((0, m_pad - m), (0, 0)))

    trans, res = pl.pallas_call(
        _linear_kernel,
        out_shape=(jax.ShapeDtypeStruct((m_pad, out_pad), jnp.bfloat16),
                   jax.ShapeDtypeStruct((m_pad, out_pad), jnp.float32)),
        grid_spec=pltpu.PrefetchScalarGridSpec(
            num_scalar_prefetch=0,
            grid=(m_pad // tm,),
            in_specs=[
                pl.BlockSpec((tm, in_pad), lambda i: (i, 0)),
                pl.BlockSpec((in_pad, out_pad), lambda i: (0, 0)),   # W resident
                pl.BlockSpec((1, out_pad), lambda i: (0, 0)),        # bias resident
                pl.BlockSpec((in_pad, out_pad), lambda i: (0, 0)),   # Wres resident
            ],
            out_specs=[
                pl.BlockSpec((tm, out_pad), lambda i: (i, 0)),
                pl.BlockSpec((tm, out_pad), lambda i: (i, 0)),
            ],
        ),
        compiler_params=pltpu.CompilerParams(
            dimension_semantics=("parallel",)),
    )(x, w, b, w_res)
    return trans[:m], res[:m]


# ---------------------------------------------------------------------------
# Kernel 2: tiled graph propagation with fused residual
#   out = A @ trans + res
# Residual is folded into the k==0 accumulator init; the only store of the
# output tile happens at the last reduction step (lean single-store epilogue).
# ---------------------------------------------------------------------------
def _propagate_kernel(a_ref, t_ref, r_ref, o_ref, acc_ref):
    k = pl.program_id(1)

    @pl.when(k == 0)
    def _():
        acc_ref[...] = r_ref[...]

    acc_ref[...] += jnp.dot(a_ref[...], t_ref[...],
                            preferred_element_type=jnp.float32)

    @pl.when(k == pl.num_programs(1) - 1)
    def _():
        o_ref[...] = acc_ref[...].astype(o_ref.dtype)


def _propagate(a, trans, res, *, tm=256, tk=512):
    """a: (M, K) bf16; trans: (K, out_pad) bf16; res: (M, out_pad) f32."""
    m, k = a.shape
    out_pad = trans.shape[1]
    tm = min(tm, _round_up(m, 16))
    tk = min(tk, _round_up(k, 128))
    m_pad = _round_up(m, tm)
    k_pad = _round_up(k, tk)
    if (m_pad, k_pad) != (m, k):
        a = jnp.pad(a, ((0, m_pad - m), (0, k_pad - k)))
    if k_pad != k:
        trans = jnp.pad(trans, ((0, k_pad - k), (0, 0)))
    if m_pad != m:
        res = jnp.pad(res, ((0, m_pad - m), (0, 0)))

    out = pl.pallas_call(
        _propagate_kernel,
        out_shape=jax.ShapeDtypeStruct((m_pad, out_pad), jnp.float32),
        grid_spec=pltpu.PrefetchScalarGridSpec(
            num_scalar_prefetch=0,
            grid=(m_pad // tm, k_pad // tk),
            in_specs=[
                pl.BlockSpec((tm, tk), lambda i, kk: (i, kk)),        # A tile
                pl.BlockSpec((tk, out_pad), lambda i, kk: (kk, 0)),   # trans tile
                pl.BlockSpec((tm, out_pad), lambda i, kk: (i, 0)),    # residual (resident over k)
            ],
            out_specs=pl.BlockSpec((tm, out_pad), lambda i, kk: (i, 0)),
            scratch_shapes=[pltpu.VMEM((tm, out_pad), jnp.float32)],
        ),
        compiler_params=pltpu.CompilerParams(
            dimension_semantics=("parallel", "arbitrary")),
    )(a, trans, res)
    return out[:m]


def graph_conv(a_graph, user_feat, item_feat, w, b, w_res, *, bipartite=True):
    """GraphConv.forward. Returns (conv_user, conv_item).

    a_graph : (N, N) normalized adjacency over [users; items] (densified sparse A).
    w, w_res: (in_dim, out_dim) = fc.weight^T and res_fc.weight^T; b: (out_dim,).
    bipartite: if True, exploit A = [[0, B],[B^T, 0]] and multiply only the two
               off-diagonal blocks (half the FLOPs/HBM traffic).  Set False for
               a general adjacency (full A @ trans, same tiled kernel).
    """
    n_users, in_dim = user_feat.shape
    n_items = item_feat.shape[0]
    out_dim = w.shape[1]

    in_pad = _round_up(in_dim, 128)
    out_pad = _round_up(out_dim, 128)

    # Lane-dense, bf16 parameters (zero padding does not change the math).
    w_p = jnp.pad(w, ((0, in_pad - in_dim), (0, out_pad - out_dim))).astype(jnp.bfloat16)
    wr_p = jnp.pad(w_res, ((0, in_pad - in_dim), (0, out_pad - out_dim))).astype(jnp.bfloat16)
    b_p = jnp.pad(b, (0, out_pad - out_dim)).reshape(1, out_pad).astype(jnp.float32)

    u_p = jnp.pad(user_feat, ((0, 0), (0, in_pad - in_dim))).astype(jnp.bfloat16)
    i_p = jnp.pad(item_feat, ((0, 0), (0, in_pad - in_dim))).astype(jnp.bfloat16)

    # Prologue: per-node linear + residual projection, computed once.
    trans_u, res_u = _linear(u_p, w_p, b_p, wr_p)
    trans_i, res_i = _linear(i_p, w_p, b_p, wr_p)

    a_bf16 = a_graph.astype(jnp.bfloat16)   # MXU-native, halves A's HBM/VMEM footprint
    if bipartite:
        # TODO(synk): torch.sparse.mm uses a sparse A; here we exploit the dense
        # bipartite block form instead of a general sparse format.
        b_ui = a_bf16[:n_users, n_users:]   # (n_users, n_items)
        b_iu = a_bf16[n_users:, :n_users]   # (n_items, n_users)
        out_u = _propagate(b_ui, trans_i, res_u)
        out_i = _propagate(b_iu, trans_u, res_i)
    else:
        trans = jnp.concatenate([trans_u, trans_i], axis=0)
        res = jnp.concatenate([res_u, res_i], axis=0)
        out = _propagate(a_bf16, trans, res)
        out_u, out_i = out[:n_users], out[n_users:]

    return out_u[:, :out_dim], out_i[:, :out_dim]


def _xavier_uniform(key, fan_out, fan_in):
    # matches nn.init.xavier_uniform_ on a (out, in) weight; returns (in, out) = W^T.
    limit = (6.0 / (fan_in + fan_out)) ** 0.5
    wt = jax.random.uniform(key, (fan_out, fan_in), jnp.float32, -limit, limit)
    return wt.T


if __name__ == "__main__":
    key = jax.random.PRNGKey(0)
    k_u, k_i, k_w, k_b, k_r, k_a = jax.random.split(key, 6)

    n_users, n_items = 48, 80          # deliberately non-aligned to exercise padding
    in_dim, out_dim = 24, 40           # in_dim != out_dim -> linear residual path
    n = n_users + n_items

    user_feat = jax.random.normal(k_u, (n_users, in_dim), jnp.float32)
    item_feat = jax.random.normal(k_i, (n_items, in_dim), jnp.float32)

    w = _xavier_uniform(k_w, out_dim, in_dim)                   # (in_dim, out_dim)
    b = jax.random.uniform(k_b, (out_dim,), jnp.float32,
                           -1.0 / (in_dim ** 0.5), 1.0 / (in_dim ** 0.5))
    w_res = _xavier_uniform(k_r, out_dim, in_dim)               # res_fc weight (no bias)

    # Deterministic normalized bipartite adjacency (densified sparse A_graph).
    mask = (jax.random.uniform(k_a, (n_users, n_items)) > 0.5).astype(jnp.float32)
    adj = jnp.zeros((n, n), jnp.float32)
    adj = adj.at[:n_users, n_users:].set(mask)
    adj = adj.at[n_users:, :n_users].set(mask.T)
    deg = jnp.clip(adj.sum(axis=1), 1.0, None)
    d_inv_sqrt = 1.0 / jnp.sqrt(deg)
    a_graph = adj * d_inv_sqrt[:, None] * d_inv_sqrt[None, :]

    # Bipartite fast path (default).
    conv_user, conv_item = graph_conv(a_graph, user_feat, item_feat, w, b, w_res,
                                      bipartite=True)
    jax.block_until_ready((conv_user, conv_item))

    # General fallback path over the full A (same tiled kernel).
    gen_user, gen_item = graph_conv(a_graph, user_feat, item_feat, w, b, w_res,
                                    bipartite=False)
    jax.block_until_ready((gen_user, gen_item))

    # bf16-aware reference (same precision choices as the kernel, f32 accumulation).
    x = jnp.concatenate([user_feat, item_feat], axis=0)
    xb = x.astype(jnp.bfloat16)
    trans_ref = (jnp.dot(xb, w.astype(jnp.bfloat16),
                         preferred_element_type=jnp.float32) + b).astype(jnp.bfloat16)
    res_ref = jnp.dot(xb, w_res.astype(jnp.bfloat16),
                      preferred_element_type=jnp.float32)
    ref = jnp.dot(a_graph.astype(jnp.bfloat16), trans_ref,
                  preferred_element_type=jnp.float32) + res_ref
    ref_u, ref_i = ref[:n_users], ref[n_users:]

    assert jnp.allclose(conv_user, ref_u, atol=1e-3, rtol=1e-3)
    assert jnp.allclose(conv_item, ref_i, atol=1e-3, rtol=1e-3)
    assert jnp.allclose(gen_user, ref_u, atol=1e-3, rtol=1e-3)
    assert jnp.allclose(gen_item, ref_i, atol=1e-3, rtol=1e-3)

    # Loose check against the pure-f32 module semantics (bf16 rounding error only).
    ref32 = a_graph @ (x @ w + b) + x @ w_res
    assert jnp.allclose(conv_user, ref32[:n_users], atol=1e-1, rtol=1e-1)
    assert jnp.allclose(conv_item, ref32[n_users:], atol=1e-1, rtol=1e-1)

    print("KERNEL_OK")
</pallas_src>

<mosaic_0001>
module attributes {stable_mosaic.version = 11 : i64} {
  func.func @_linear_kernel(%arg0: i32, %arg1: memref<48x128xbf16, #tpu.memory_space<vmem>>, %arg2: memref<128x128xbf16, #tpu.memory_space<vmem>>, %arg3: memref<1x128xf32, #tpu.memory_space<vmem>>, %arg4: memref<128x128xbf16, #tpu.memory_space<vmem>>, %arg5: memref<48x128xbf16, #tpu.memory_space<vmem>>, %arg6: memref<48x128xf32, #tpu.memory_space<vmem>>) attributes {dimension_semantics = [#tpu.dimension_semantics<parallel>], iteration_bounds = array<i64: 1>, scalar_prefetch = 0 : i64, scratch_operands = 0 : i64, tpu.core_type = #tpu.core_type<tc>, window_params = [{transform_indices = @transform_0, window_bounds = array<i64: 48, 128>}, {pipeline_mode = #tpu.pipeline_mode<synchronous>, transform_indices = @transform_1, window_bounds = array<i64: 128, 128>}, {pipeline_mode = #tpu.pipeline_mode<synchronous>, transform_indices = @transform_2, window_bounds = array<i64: 1, 128>}, {pipeline_mode = #tpu.pipeline_mode<synchronous>, transform_indices = @transform_3, window_bounds = array<i64: 128, 128>}, {transform_indices = @transform_4, window_bounds = array<i64: 48, 128>}, {transform_indices = @transform_5, window_bounds = array<i64: 48, 128>}]} {
    %c0 = arith.constant 0 : index
    %c0_0 = arith.constant 0 : index
    %0 = vector.load %arg1[%c0, %c0_0] : memref<48x128xbf16, #tpu.memory_space<vmem>>, vector<48x128xbf16>
    %c0_1 = arith.constant 0 : index
    %c0_2 = arith.constant 0 : index
    %1 = vector.load %arg2[%c0_1, %c0_2] : memref<128x128xbf16, #tpu.memory_space<vmem>>, vector<128x128xbf16>
    %cst = arith.constant dense<0.000000e+00> : vector<48x128xf32>
    %2 = tpu.matmul %0, %1, %cst {dimension_numbers = #tpu.dot_dimension_numbers<[1], [0], [0], [1], [0, 0, 1, 1], [], []>} : vector<48x128xbf16>, vector<128x128xbf16>, vector<48x128xf32> -> vector<48x128xf32>
    %c0_3 = arith.constant 0 : index
    %c0_4 = arith.constant 0 : index
    %3 = vector.load %arg3[%c0_3, %c0_4] : memref<1x128xf32, #tpu.memory_space<vmem>>, vector<1x128xf32>
    %4 = vector.broadcast %3 : vector<1x128xf32> to vector<48x128xf32>
    %5 = arith.addf %2, %4 : vector<48x128xf32>
    %6 = arith.truncf %5 : vector<48x128xf32> to vector<48x128xbf16>
    %c0_5 = arith.constant 0 : index
    %c0_6 = arith.constant 0 : index
    %7 = vector.load %arg5[%c0_5, %c0_6] : memref<48x128xbf16, #tpu.memory_space<vmem>>, vector<48x128xbf16>
    tpu.vector_store %arg5[%c0_5, %c0_6], %6 {strides = array<i32>} : memref<48x128xbf16, #tpu.memory_space<vmem>>, vector<48x128xbf16>,
    %c0_7 = arith.constant 0 : index
    %c0_8 = arith.constant 0 : index
    %8 = vector.load %arg4[%c0_7, %c0_8] : memref<128x128xbf16, #tpu.memory_space<vmem>>, vector<128x128xbf16>
    %cst_9 = arith.constant dense<0.000000e+00> : vector<48x128xf32>
    %9 = tpu.matmul %0, %8, %cst_9 {dimension_numbers = #tpu.dot_dimension_numbers<[1], [0], [0], [1], [0, 0, 1, 1], [], []>} : vector<48x128xbf16>, vector<128x128xbf16>, vector<48x128xf32> -> vector<48x128xf32>
    %c0_10 = arith.constant 0 : index
    %c0_11 = arith.constant 0 : index
    %10 = vector.load %arg6[%c0_10, %c0_11] : memref<48x128xf32, #tpu.memory_space<vmem>>, vector<48x128xf32>
    tpu.vector_store %arg6[%c0_10, %c0_11], %9 {strides = array<i32>} : memref<48x128xf32, #tpu.memory_space<vmem>>, vector<48x128xf32>,
    return
  }
  func.func @transform_0(%arg0: i32) -> (i32, i32) {
    %c0_i32 = arith.constant 0 : i32
    %c0_i32_0 = arith.constant 0 : i32
    return %arg0, %c0_i32 : i32, i32
  }
  func.func @transform_1(%arg0: i32) -> (i32, i32) {
    %c0_i32 = arith.constant 0 : i32
    %c0_i32_0 = arith.constant 0 : i32
    %c0_i32_1 = arith.constant 0 : i32
    return %c0_i32, %c0_i32_0 : i32, i32
  }
  func.func @transform_2(%arg0: i32) -> (i32, i32) {
    %c0_i32 = arith.constant 0 : i32
    %c0_i32_0 = arith.constant 0 : i32
    %c0_i32_1 = arith.constant 0 : i32
    return %c0_i32, %c0_i32_0 : i32, i32
  }
  func.func @transform_3(%arg0: i32) -> (i32, i32) {
    %c0_i32 = arith.constant 0 : i32
    %c0_i32_0 = arith.constant 0 : i32
    %c0_i32_1 = arith.constant 0 : i32
    return %c0_i32, %c0_i32_0 : i32, i32
  }
  func.func @transform_4(%arg0: i32) -> (i32, i32) {
    %c0_i32 = arith.constant 0 : i32
    %c0_i32_0 = arith.constant 0 : i32
    return %arg0, %c0_i32 : i32, i32
  }
  func.func @transform_5(%arg0: i32) -> (i32, i32) {
    %c0_i32 = arith.constant 0 : i32
    %c0_i32_0 = arith.constant 0 : i32
    return %arg0, %c0_i32 : i32, i32
  }
}

</mosaic_0001>

<llo_original>
// kernel: tpu_custom_call.1
$region0: #{tpu_custom_call.1}
  #allocation0 [shape = 'u32[]', space=smem, size = 0x4, offset = 0x4, fixed_abs, tag = 'smem constant byte address 0x4 - core index']
  #allocation1 [shape = 'u32[144,128]{1,0:T(1,128)}', space=vmem, size = 0x12000, scoped, tag = 'internal scratch']
  %s0 = inlined_call_operand.hbm [shape: bf16[48,128], index: 0, kind: input, shape index: {}]
  %s1 = inlined_call_operand.hbm [shape: bf16[128,128], index: 1, kind: input, shape index: {}]
  %s2 = inlined_call_operand.vmem [shape: f32[1,128], index: 2, kind: input, shape index: {}]
  %s3 = inlined_call_operand.hbm [shape: bf16[128,128], index: 3, kind: input, shape index: {}]
  %s4 = inlined_call_operand.hbm [shape: bf16[48,128], index: 4, kind: output, shape index: {0}]
  %s5 = inlined_call_operand.hbm [shape: f32[48,128], index: 5, kind: output, shape index: {1}]
  %6 = xla_tuple %s4, %s5
  %s7 = sld [smem:[#allocation0]]
  $region46: #{tpu_custom_call.1} parent=0
    _
  %s9 = ssub.s32 1, %s7
  %s10 = scalar_select 0, %s9, %s7
  $region1: #{tpu_custom_call.1} parent=0
    #allocation2 [shape = 'u8[12288]{0}', space=vmem, size = 0x3000, scoped, tag = 'input window, operand 0, single buffered']
    #allocation3 [shape = 's32[1]{0}', space=sflag, size = 0x4, scoped, tag = 'scoped memory for tpu_custom_call.1']
    #allocation4 [shape = 's32[1]{0}', space=sflag, size = 0x4, scoped, tag = 'scoped memory for tpu_custom_call.1']
    #allocation5 [shape = 'u8[32768]{0}', space=vmem, size = 0x8000, scoped, tag = 'input window, operand 1, single buffered']
    #allocation6 [shape = 's32[1]{0}', space=sflag, size = 0x4, scoped, tag = 'scoped memory for tpu_custom_call.1']
    #allocation7 [shape = 'u8[32768]{0}', space=vmem, size = 0x8000, scoped, tag = 'input window, operand 3, single buffered']
    #allocation8 [shape = 'u8[12288]{0}', space=vmem, size = 0x3000, scoped, tag = 'output window, operand 0, single buffered']
    #allocation9 [shape = 'u8[24576]{0}', space=vmem, size = 0x6000, scoped, tag = 'output window, operand 1, single buffered']
    #allocation10 [shape = 's32[1]{0}', space=sflag, size = 0x4, scoped, tag = 'scoped memory for tpu_custom_call.1']
    %11 = vsyncpa [#allocation3], 0
    %12 = vsyncpa [#allocation6], 0
    %13 = vsyncpa [#allocation4], 0
    %14 = vsyncpa [#allocation10], 0
    // Predicated region
    $region2: #{tpu_custom_call.1} parent=1 // pred_check
      _
    $region3: #{tpu_custom_call.1} parent=1 // pred_check_branch
      %16 = sbr.rel (0) target = $region5
    $region4: #{tpu_custom_call.1} parent=1 // pred_region
      %s18 = ssub.s32 384, 384
      %19 = vsyncadd [#allocation3], %s18
      %s20 = sshll.u32 [#allocation2], 4
      %s21 = int_to_ptr.vmem [resolvable:$true] %s20
      %26 = dma.hbm_to_vmem [thread:$0]  %s0, 384, %s21, [#allocation3], 64, 64, 4
    $region5: #{tpu_custom_call.1} parent=1 // pred_fallthru
      _
    // Predicated region
    $region6: #{tpu_custom_call.1} parent=1 // pred_check
      _
    $region7: #{tpu_custom_call.1} parent=1 // pred_check_branch
      %28 = sbr.rel (0) target = $region9
    $region8: #{tpu_custom_call.1} parent=1 // pred_region
      %s30 = ssub.s32 1024, 1024
      %31 = vsyncadd [#allocation6], %s30
      %s32 = sshll.u32 [#allocation5], 4
      %s33 = int_to_ptr.vmem [resolvable:$true] %s32
      %38 = dma.hbm_to_vmem [thread:$0]  %s1, 1024, %s33, [#allocation6], 64, 64, 4
    $region9: #{tpu_custom_call.1} parent=1 // pred_fallthru
      _
    // Predicated region
    $region10: #{tpu_custom_call.1} parent=1 // pred_check
      _
    $region11: #{tpu_custom_call.1} parent=1 // pred_check_branch
      %40 = sbr.rel (0) target = $region13
    $region12: #{tpu_custom_call.1} parent=1 // pred_region
      _
    $region13: #{tpu_custom_call.1} parent=1 // pred_fallthru
      _
    // Predicated region
    $region14: #{tpu_custom_call.1} parent=1 // pred_check
      _
    $region15: #{tpu_custom_call.1} parent=1 // pred_check_branch
      %42 = sbr.rel (0) target = $region17
    $region16: #{tpu_custom_call.1} parent=1 // pred_region
      %s44 = ssub.s32 1024, 1024
      %45 = vsyncadd [#allocation6], %s44
      %s46 = sshll.u32 [#allocation7], 4
      %s47 = int_to_ptr.vmem [resolvable:$true] %s46
      %52 = dma.hbm_to_vmem [thread:$0]  %s3, 1024, %s47, [#allocation6], 64, 64, 4
    $region17: #{tpu_custom_call.1} parent=1 // pred_fallthru
      _
    // Predicated region
    $region18: #{tpu_custom_call.1} parent=1 // pred_check
      _
    $region19: #{tpu_custom_call.1} parent=1 // pred_check_branch
      %54 = sbr.rel (0) target = $region21
    $region20: #{tpu_custom_call.1} parent=1 // pred_region
      %55 = dma.done [#allocation3], 384
    $region21: #{tpu_custom_call.1} parent=1 // pred_fallthru
      _
    // Predicated region
    $region22: #{tpu_custom_call.1} parent=1 // pred_check
      _
    $region23: #{tpu_custom_call.1} parent=1 // pred_check_branch
      %57 = sbr.rel (0) target = $region25
    $region24: #{tpu_custom_call.1} parent=1 // pred_region
      %58 = dma.done [#allocation6], 1024
    $region25: #{tpu_custom_call.1} parent=1 // pred_fallthru
      _
    // Predicated region
    $region26: #{tpu_custom_call.1} parent=1 // pred_check
      _
    $region27: #{tpu_custom_call.1} parent=1 // pred_check_branch
      %60 = sbr.rel (0) target = $region29
    $region28: #{tpu_custom_call.1} parent=1 // pred_region
      %61 = dma.done [#allocation6], 1024
    $region29: #{tpu_custom_call.1} parent=1 // pred_fallthru
      _
    %v63 = vld [vmem:[#allocation2] sm:$0xf]
    %v64 = vld [vmem:[#allocation2 + $0x4] sm:$0xf]
    %v65 = vld [vmem:[#allocation2 + $0x8] sm:$0xf]
    %v66 = vld [vmem:[#allocation2 + $0xc] sm:$0xf]
    %v67 = vld [vmem:[#allocation2 + $0x10] sm:$0xf]
    %v68 = vld [vmem:[#allocation2 + $0x14] sm:$0xf]
    %v69 = vld [vmem:[#allocation5] sm:$0xf]
    %v70 = vld [vmem:[#allocation5 + $0x4] sm:$0xf]
    %v71 = vld [vmem:[#allocation5 + $0x8] sm:$0xf]
    %v72 = vld [vmem:[#allocation5 + $0xc] sm:$0xf]
    %v73 = vld [vmem:[#allocation5 + $0x10] sm:$0xf]
    %v74 = vld [vmem:[#allocation5 + $0x14] sm:$0xf]
    %v75 = vld [vmem:[#allocation5 + $0x18] sm:$0xf]
    %v76 = vld [vmem:[#allocation5 + $0x1c] sm:$0xf]
    %v77 = vld [vmem:[#allocation5 + $0x20] sm:$0xf]
    %v78 = vld [vmem:[#allocation5 + $0x24] sm:$0xf]
    %v79 = vld [vmem:[#allocation5 + $0x28] sm:$0xf]
    %v80 = vld [vmem:[#allocation5 + $0x2c] sm:$0xf]
    %v81 = vld [vmem:[#allocation5 + $0x30] sm:$0xf]
    %v82 = vld [vmem:[#allocation5 + $0x34] sm:$0xf]
    %v83 = vld [vmem:[#allocation5 + $0x38] sm:$0xf]
    %v84 = vld [vmem:[#allocation5 + $0x3c] sm:$0xf]
    %v85 = vld [vmem:[%s2] sm:$0x1]
    %v87 = vlaneseq
    %v88 = vshrl.u32 %v87, 7
    %v89 = vsub.s32 0, %v88
    %v90 = vrot.slane %v85, %v89
    %v98 = vunpack.c.l.b16 %v63
    %v99 = vunpack.c.l.b16 %v64
    %v100 = vunpack.c.l.b16 %v65
    %v101 = vunpack.c.l.b16 %v66
    %v102 = vunpack.c.l.b16 %v67
    %v103 = vunpack.c.l.b16 %v68
    %v104 = vpack.c.b16 %v99, %v98
    %v105 = vpack.c.b16 %v101, %v100
    %v106 = vpack.c.b16 %v103, %v102
    %v126 = vunpack.c.l.b16 %v69
    %v127 = vunpack.c.l.b16 %v70
    %v128 = vunpack.c.l.b16 %v71
    %v129 = vunpack.c.l.b16 %v72
    %v130 = vunpack.c.l.b16 %v73
    %v131 = vunpack.c.l.b16 %v74
    %v132 = vunpack.c.l.b16 %v75
    %v133 = vunpack.c.l.b16 %v76
    %v134 = vunpack.c.l.b16 %v77
    %v135 = vunpack.c.l.b16 %v78
    %v136 = vunpack.c.l.b16 %v79
    %v137 = vunpack.c.l.b16 %v80
    %v138 = vunpack.c.l.b16 %v81
    %v139 = vunpack.c.l.b16 %v82
    %v140 = vunpack.c.l.b16 %v83
    %v141 = vunpack.c.l.b16 %v84
    %v142 = vpack.c.b16 %v127, %v126
    %v143 = vpack.c.b16 %v129, %v128
    %v144 = vpack.c.b16 %v131, %v130
    %v145 = vpack.c.b16 %v133, %v132
    %v146 = vpack.c.b16 %v135, %v134
    %v147 = vpack.c.b16 %v137, %v136
    %v148 = vpack.c.b16 %v139, %v138
    %v149 = vpack.c.b16 %v141, %v140
    %158 = vmatprep.subr.bf16.mxu0 0
    %159 = vmatpush1.bf16.msra.mxu0 %v142
    %160 = vmatprep.subr.bf16.mxu0 0
    %161 = vmatpush1.bf16.msra.mxu0 %v143
    %162 = vmatprep.subr.bf16.mxu0 0
    %163 = vmatpush1.bf16.msra.mxu0 %v144
    %164 = vmatprep.subr.bf16.mxu0 0
    %165 = vmatpush1.bf16.msra.mxu0 %v145
    %166 = vmatprep.subr.bf16.mxu0 0
    %167 = vmatpush1.bf16.msra.mxu0 %v146
    %168 = vmatprep.subr.bf16.mxu0 0
    %169 = vmatpush1.bf16.msra.mxu0 %v147
    %170 = vmatprep.subr.bf16.mxu0 0
    %171 = vmatpush1.bf16.msra.mxu0 %v148
    %172 = vmatprep.subr.bf16.mxu0 0
    %173 = vmatpush1.bf16.msra.mxu0 %v149
    %174 = vmatprep.subr.bf16.mxu0 0
    %175 = vmatpush1.bf16.msra.mxu0 0
    %176 = vmatprep.subr.bf16.mxu0 0
    %177 = vmatpush1.bf16.msra.mxu0 0
    %178 = vmatprep.subr.bf16.mxu0 0
    %179 = vmatpush1.bf16.msra.mxu0 0
    %180 = vmatprep.subr.bf16.mxu0 0
    %181 = vmatpush1.bf16.msra.mxu0 0
    %182 = vmatprep.subr.bf16.mxu0 0
    %183 = vmatpush1.bf16.msra.mxu0 0
    %184 = vmatprep.subr.bf16.mxu0 0
    %185 = vmatpush1.bf16.msra.mxu0 0
    %186 = vmatprep.subr.bf16.mxu0 0
    %187 = vmatpush1.bf16.msra.mxu0 0
    %188 = vmatprep.subr.bf16.mxu0 0
    %189 = vmatpush1.bf16.msra.mxu0 0
    %190 = vmatprep.mubr.bf16.mxu0 0
    %191 = vmatmul.mubr.bf16.gmra.mrb[0].mxu0 %v104
    %v192 = vpop.f32.mrb[0].mxu0
    %v193 = vadd.f32 %v90, %v192
    %v194 = vpop.f32.mrb[0].mxu0
    %v195 = vpop.f32.mrb[0].mxu0
    %v196 = vadd.f32 %v90, %v195
    %v197 = vpop.f32.mrb[0].mxu0
    %198 = vmatprep.mubr.bf16.mxu0 0
    %199 = vmatmul.mubr.bf16.gmra.mrb[0].mxu0 %v105
    %v200 = vpop.f32.mrb[0].mxu0
    %v201 = vadd.f32 %v90, %v200
    %v202 = vpop.f32.mrb[0].mxu0
    %v203 = vpop.f32.mrb[0].mxu0
    %v204 = vadd.f32 %v90, %v203
    %v205 = vpop.f32.mrb[0].mxu0
    %206 = vmatprep.mubr.bf16.mxu0 0
    %207 = vmatmul.mubr.bf16.gmra.mrb[0].mxu0 %v106
    %v208 = vpop.f32.mrb[0].mxu0
    %v209 = vadd.f32 %v90, %v208
    %v210 = vpop.f32.mrb[0].mxu0
    %v211 = vpop.f32.mrb[0].mxu0
    %v212 = vadd.f32 %v90, %v211
    %v213 = vpop.f32.mrb[0].mxu0
    %214 = vdwg.mxu0
    %v215 = vpack.c.bf16 %v196, %v193
    %v216 = vpack.c.bf16 %v204, %v201
    %v217 = vpack.c.bf16 %v212, %v209
    %v221 = vunpack.c.l.b16 %v215
    %v222 = vunpack.c.h.b16 %v215
    %v223 = vunpack.c.l.b16 %v216
    %v224 = vunpack.c.h.b16 %v216
    %v225 = vunpack.c.l.b16 %v217
    %v226 = vunpack.c.h.b16 %v217
    %v227 = vpack.c.b16 %v221, %v221
    %v228 = vpack.c.b16 %v222, %v222
    %v229 = vpack.c.b16 %v223, %v223
    %v230 = vpack.c.b16 %v224, %v224
    %v231 = vpack.c.b16 %v225, %v225
    %v232 = vpack.c.b16 %v226, %v226
    %239 = vst [vmem:[#allocation8] sm:$0xf] %v227
    %240 = vst [vmem:[#allocation8 + $0x4] sm:$0xf] %v228
    %241 = vst [vmem:[#allocation8 + $0x8] sm:$0xf] %v229
    %242 = vst [vmem:[#allocation8 + $0xc] sm:$0xf] %v230
    %243 = vst [vmem:[#allocation8 + $0x10] sm:$0xf] %v231
    %244 = vst [vmem:[#allocation8 + $0x14] sm:$0xf] %v232
    %v245 = vld [vmem:[#allocation7] sm:$0xf]
    %v246 = vld [vmem:[#allocation7 + $0x4] sm:$0xf]
    %v247 = vld [vmem:[#allocation7 + $0x8] sm:$0xf]
    %v248 = vld [vmem:[#allocation7 + $0xc] sm:$0xf]
    %v249 = vld [vmem:[#allocation7 + $0x10] sm:$0xf]
    %v250 = vld [vmem:[#allocation7 + $0x14] sm:$0xf]
    %v251 = vld [vmem:[#allocation7 + $0x18] sm:$0xf]
    %v252 = vld [vmem:[#allocation7 + $0x1c] sm:$0xf]
    %v253 = vld [vmem:[#allocation7 + $0x20] sm:$0xf]
    %v254 = vld [vmem:[#allocation7 + $0x24] sm:$0xf]
    %v255 = vld [vmem:[#allocation7 + $0x28] sm:$0xf]
    %v256 = vld [vmem:[#allocation7 + $0x2c] sm:$0xf]
    %v257 = vld [vmem:[#allocation7 + $0x30] sm:$0xf]
    %v258 = vld [vmem:[#allocation7 + $0x34] sm:$0xf]
    %v259 = vld [vmem:[#allocation7 + $0x38] sm:$0xf]
    %v260 = vld [vmem:[#allocation7 + $0x3c] sm:$0xf]
    %v277 = vunpack.c.l.b16 %v245
    %v278 = vunpack.c.l.b16 %v246
    %v279 = vunpack.c.l.b16 %v247
    %v280 = vunpack.c.l.b16 %v248
    %v281 = vunpack.c.l.b16 %v249
    %v282 = vunpack.c.l.b16 %v250
    %v283 = vunpack.c.l.b16 %v251
    %v284 = vunpack.c.l.b16 %v252
    %v285 = vunpack.c.l.b16 %v253
    %v286 = vunpack.c.l.b16 %v254
    %v287 = vunpack.c.l.b16 %v255
    %v288 = vunpack.c.l.b16 %v256
    %v289 = vunpack.c.l.b16 %v257
    %v290 = vunpack.c.l.b16 %v258
    %v291 = vunpack.c.l.b16 %v259
    %v292 = vunpack.c.l.b16 %v260
    %v293 = vpack.c.b16 %v278, %v277
    %v294 = vpack.c.b16 %v280, %v279
    %v295 = vpack.c.b16 %v282, %v281
    %v296 = vpack.c.b16 %v284, %v283
    %v297 = vpack.c.b16 %v286, %v285
    %v298 = vpack.c.b16 %v288, %v287
    %v299 = vpack.c.b16 %v290, %v289
    %v300 = vpack.c.b16 %v292, %v291
    %309 = vmatprep.subr.bf16.mxu0 0
    %310 = vmatpush1.bf16.msra.mxu0 %v293
    %311 = vmatprep.subr.bf16.mxu0 0
    %312 = vmatpush1.bf16.msra.mxu0 %v294
    %313 = vmatprep.subr.bf16.mxu0 0
    %314 = vmatpush1.bf16.msra.mxu0 %v295
    %315 = vmatprep.subr.bf16.mxu0 0
    %316 = vmatpush1.bf16.msra.mxu0 %v296
    %317 = vmatprep.subr.bf16.mxu0 0
    %318 = vmatpush1.bf16.msra.mxu0 %v297
    %319 = vmatprep.subr.bf16.mxu0 0
    %320 = vmatpush1.bf16.msra.mxu0 %v298
    %321 = vmatprep.subr.bf16.mxu0 0
    %322 = vmatpush1.bf16.msra.mxu0 %v299
    %323 = vmatprep.subr.bf16.mxu0 0
    %324 = vmatpush1.bf16.msra.mxu0 %v300
    %325 = vmatprep.subr.bf16.mxu0 0
    %326 = vmatpush1.bf16.msra.mxu0 0
    %327 = vmatprep.subr.bf16.mxu0 0
    %328 = vmatpush1.bf16.msra.mxu0 0
    %329 = vmatprep.subr.bf16.mxu0 0
    %330 = vmatpush1.bf16.msra.mxu0 0
    %331 = vmatprep.subr.bf16.mxu0 0
    %332 = vmatpush1.bf16.msra.mxu0 0
    %333 = vmatprep.subr.bf16.mxu0 0
    %334 = vmatpush1.bf16.msra.mxu0 0
    %335 = vmatprep.subr.bf16.mxu0 0
    %336 = vmatpush1.bf16.msra.mxu0 0
    %337 = vmatprep.subr.bf16.mxu0 0
    %338 = vmatpush1.bf16.msra.mxu0 0
    %339 = vmatprep.subr.bf16.mxu0 0
    %340 = vmatpush1.bf16.msra.mxu0 0
    %341 = vmatprep.mubr.bf16.mxu0 0
    %342 = vmatmul.mubr.bf16.gmra.mrb[0].mxu0 %v104
    %v343 = vpop.f32.mrb[0].mxu0
    %v344 = vadd.f32 0.0, %v343
    %v345 = vpop.f32.mrb[0].mxu0
    %v346 = vpop.f32.mrb[0].mxu0
    %v347 = vadd.f32 0.0, %v346
    %v348 = vpop.f32.mrb[0].mxu0
    %349 = vmatprep.mubr.bf16.mxu0 0
    %350 = vmatmul.mubr.bf16.gmra.mrb[0].mxu0 %v105
    %v351 = vpop.f32.mrb[0].mxu0
    %v352 = vadd.f32 0.0, %v351
    %v353 = vpop.f32.mrb[0].mxu0
    %v354 = vpop.f32.mrb[0].mxu0
    %v355 = vadd.f32 0.0, %v354
    %v356 = vpop.f32.mrb[0].mxu0
    %357 = vmatprep.mubr.bf16.mxu0 0
    %358 = vmatmul.mubr.bf16.gmra.mrb[0].mxu0 %v106
    %v359 = vpop.f32.mrb[0].mxu0
    %v360 = vadd.f32 0.0, %v359
    %v361 = vpop.f32.mrb[0].mxu0
    %v362 = vpop.f32.mrb[0].mxu0
    %v363 = vadd.f32 0.0, %v362
    %v364 = vpop.f32.mrb[0].mxu0
    %365 = vdwg.mxu0
    %366 = vst [vmem:[#allocation9] sm:$0xff] %v344
    %367 = vst [vmem:[#allocation9 + $0x8] sm:$0xff] %v347
    %368 = vst [vmem:[#allocation9 + $0x10] sm:$0xff] %v352
    %369 = vst [vmem:[#allocation9 + $0x18] sm:$0xff] %v355
    %370 = vst [vmem:[#allocation9 + $0x20] sm:$0xff] %v360
    %371 = vst [vmem:[#allocation9 + $0x28] sm:$0xff] %v363
    // Predicated region
    $region30: #{tpu_custom_call.1} parent=1 // pred_check
      _
    $region31: #{tpu_custom_call.1} parent=1 // pred_check_branch
      %373 = sbr.rel (0) target = $region33
    $region32: #{tpu_custom_call.1} parent=1 // pred_region
      %s375 = ssub.s32 384, 384
      %376 = vsyncadd [#allocation4], %s375
      %s377 = sshll.u32 [#allocation8], 4
      %s378 = int_to_ptr.vmem [resolvable:$true] %s377
      %383 = dma.vmem_to_hbm [thread:$0]  %s378, 384, %s4, [#allocation4], 64, 64, 4
    $region33: #{tpu_custom_call.1} parent=1 // pred_fallthru
      _
    // Predicated region
    $region34: #{tpu_custom_call.1} parent=1 // pred_check
      _
    $region35: #{tpu_custom_call.1} parent=1 // pred_check_branch
      %385 = sbr.rel (0) target = $region37
    $region36: #{tpu_custom_call.1} parent=1 // pred_region
      %s387 = ssub.s32 768, 768
      %388 = vsyncadd [#allocation10], %s387
      %s389 = sshll.u32 [#allocation9], 4
      %s390 = int_to_ptr.vmem [resolvable:$true] %s389
      %395 = dma.vmem_to_hbm [thread:$0]  %s390, 768, %s5, [#allocation10], 128, 128, 8
    $region37: #{tpu_custom_call.1} parent=1 // pred_fallthru
      _
    // Predicated region
    $region38: #{tpu_custom_call.1} parent=1 // pred_check
      _
    $region39: #{tpu_custom_call.1} parent=1 // pred_check_branch
      %397 = sbr.rel (0) target = $region41
    $region40: #{tpu_custom_call.1} parent=1 // pred_region
      %398 = dma.done [#allocation4], 384
    $region41: #{tpu_custom_call.1} parent=1 // pred_fallthru
      _
    // Predicated region
    $region42: #{tpu_custom_call.1} parent=1 // pred_check
      _
    $region43: #{tpu_custom_call.1} parent=1 // pred_check_branch
      %400 = sbr.rel (0) target = $region45
    $region44: #{tpu_custom_call.1} parent=1 // pred_region
      %401 = dma.done [#allocation10], 768
    $region45: #{tpu_custom_call.1} parent=1 // pred_fallthru
      _
    %402 = vsyncpa [#allocation3], 1
    %403 = vsyncpa [#allocation6], 1
    %404 = vsyncpa [#allocation4], 1
    %405 = vsyncpa [#allocation10], 1

</llo_original>
